<compile_context>
chip_gen: v5e
topology: v5e:2x2
jax: 0.10.0
libtpu: 0.0.40
codegen_flags: <defaults>
</compile_context>

<pallas_src>
import functools

import jax
import jax.numpy as jnp
import numpy as np
from jax.experimental import pallas as pl
from jax.experimental.pallas import tpu as pltpu

_LANES = 128


def _round_up(x, m):
    return ((x + m - 1) // m) * m


def _tpu_tuning():
    """Return (max_tile_rows, n_split, vmem_limit_bytes or None) per TPU gen."""
    kind = ""
    try:
        kind = (jax.devices()[0].device_kind or "").lower()
    except Exception:
        pass
    if "v7" in kind or "7x" in kind:
        # v7x: 3.2 TB/s HBM + 2 TensorCores -> bigger tiles (1 MiB f32) to
        # amortize the ~0.35us/step overhead, explicit VMEM budget, and a
        # 2-way parallel split of the reduction grid.
        return 2048, 2, 32 * 1024 * 1024
    # v5e / v6e are single-TensorCore; 512 KiB tiles already amortize the
    # per-step overhead and 3 streams x 2 buffers stays well inside v5e's
    # 16 MiB default scoped VMEM.
    return 1024, 1, None


def _pow_static(p, gamma):
    """p ** gamma with static gamma; small integer gamma -> repeated multiply."""
    g = float(gamma)
    if g.is_integer() and 0 <= int(g) <= 8:
        gi = int(g)
        if gi == 0:
            return jnp.ones_like(p)
        out = p
        for _ in range(gi - 1):
            out = out * p
        return out
    return jnp.power(p, g)


def _focal_elementwise(x, t, alpha, gamma):
    """Per-element focal loss in f32.

    Shares one exp + one log1p per element:
      sigmoid(-x) = 1 - sigmoid(x),  logsigmoid(-x) = logsigmoid(x) - x.
    The reciprocal runs on the EUP slot (pl.reciprocal), not the VALU divide
    sequence, which matters where the VALU slot saturates first (v7x / bf16).
    """
    z = jnp.exp(-jnp.abs(x))                            # exp(-|x|)
    inv = pl.reciprocal(1.0 + z, approx=False)          # 1 / (1 + exp(-|x|))
    sig_pos = jnp.where(x >= 0, 1.0, z) * inv           # sigmoid(x)
    sig_neg = 1.0 - sig_pos                             # sigmoid(-x)
    log_sig_pos = jnp.minimum(x, 0.0) - jnp.log1p(z)    # log_sigmoid(x)
    log_sig_neg = log_sig_pos - x                       # log_sigmoid(-x)
    return (-alpha * _pow_static(sig_neg, gamma) * t * log_sig_pos
            - (1.0 - alpha) * _pow_static(sig_pos, gamma) * (1.0 - t) * log_sig_neg)


def _elem_kernel(x_ref, t_ref, o_ref, *, alpha, gamma):
    x = x_ref[...].astype(jnp.float32)
    t = t_ref[...].astype(jnp.float32)
    o_ref[...] = _focal_elementwise(x, t, alpha, gamma).astype(o_ref.dtype)


def _reduce_kernel(x_ref, t_ref, o_ref, *, alpha, gamma, total, tile_rows,
                   inner, first_tail_tile):
    c = pl.program_id(0)   # parallel slice (megacore split on v7x)
    i = pl.program_id(1)   # reduction steps within a slice

    @pl.when(i == 0)
    def _():
        o_ref[...] = jnp.zeros_like(o_ref)

    x = x_ref[...].astype(jnp.float32)
    t = t_ref[...].astype(jnp.float32)
    loss = _focal_elementwise(x, t, alpha, gamma)
    tile_idx = c * inner + i

    # Interior tiles: pure VPU fold into the resident (8,128) partial, no
    # masking work at all (moved out of the hot loop per perf review).
    @pl.when(tile_idx < first_tail_tile)
    def _():
        o_ref[...] += jnp.sum(loss.reshape(tile_rows // 8, 8, _LANES), axis=0)

    # Tail tile (and any split-replicated tile beyond the data): mask the
    # ragged / out-of-bounds region.  The comparison is done on the global ROW
    # index (never a flat element index), so it stays int32-safe for tensors
    # with >= 2^31 elements.
    @pl.when(tile_idx >= first_tail_tile)
    def _():
        row = jax.lax.broadcasted_iota(jnp.int32, (tile_rows, _LANES), 0)
        lane = jax.lax.broadcasted_iota(jnp.int32, (tile_rows, _LANES), 1)
        grow = tile_idx * tile_rows + row          # global row index
        full_rows = total // _LANES                # static
        rem = total % _LANES                       # static
        mask = jnp.logical_or(
            grow < full_rows,
            jnp.logical_and(grow == full_rows, lane < rem))
        masked = jnp.where(mask, loss, 0.0)
        o_ref[...] += jnp.sum(masked.reshape(tile_rows // 8, 8, _LANES), axis=0)


def _lane_slab(x, rows):
    """View x as a (rows, 128) lane-dense slab; pad only the <128-elem tail."""
    flat = x.reshape(-1)                 # free (bitcast)
    pad = rows * _LANES - flat.shape[0]
    if pad:
        flat = jnp.pad(flat, (0, pad))   # only when total % 128 != 0
    return flat.reshape(rows, _LANES), pad > 0


def binary_focal_loss_with_logits_pallas(logits, target, alpha, gamma=2.0,
                                         reduction="none"):
    if logits.ndim < 2:
        raise ValueError(f"Invalid input shape, we expect BxCx*. Got: {logits.shape}")
    if logits.shape[0] != target.shape[0]:
        raise ValueError(
            f"Expected input batch_size ({logits.shape[0]}) to match target "
            f"batch_size ({target.shape[0]}).")
    if reduction not in ("none", "mean", "sum"):
        raise NotImplementedError(f"Invalid reduction mode: {reduction}")

    alpha = float(alpha)
    gamma = float(gamma)
    orig_shape = logits.shape
    total = int(np.prod(orig_shape))
    if total == 0:
        if reduction == "none":
            return jnp.zeros(orig_shape, logits.dtype)
        if reduction == "sum":
            return jnp.zeros((), jnp.float32)
        return jnp.full((), jnp.nan, jnp.float32)

    max_tile_rows, n_split, vmem_limit = _tpu_tuning()
    rows = -(-total // _LANES)                       # cdiv(total, 128)
    tile_rows = min(max_tile_rows, _round_up(rows, 8))
    n_tiles = -(-rows // tile_rows)
    in_bytes = total * (logits.dtype.itemsize + target.dtype.itemsize)

    x2d, x_padded = _lane_slab(logits, rows)
    t2d, _ = _lane_slab(target, rows)
    padded = x_padded                                # same `total` for both

    def _cparams(dim_sem):
        kw = dict(dimension_semantics=dim_sem)
        if vmem_limit is not None:
            kw["vmem_limit_bytes"] = vmem_limit
        if padded:
            # Let XLA fuse the tail-pad producers into the pallas_call so the
            # pad is not a separate full-array HBM read+write.
            try:
                return pltpu.CompilerParams(allow_input_fusion=[True, True], **kw)
            except TypeError:
                pass
        return pltpu.CompilerParams(**kw)

    if reduction == "none":
        tile_spec = pl.BlockSpec((tile_rows, _LANES), lambda i: (i, 0))
        kernel = functools.partial(_elem_kernel, alpha=alpha, gamma=gamma)
        out2d = pl.pallas_call(
            kernel,
            out_shape=jax.ShapeDtypeStruct((rows, _LANES), logits.dtype),
            grid_spec=pltpu.PrefetchScalarGridSpec(
                num_scalar_prefetch=0,
                grid=(n_tiles,),
                in_specs=[tile_spec, tile_spec],
                out_specs=tile_spec,
            ),
            compiler_params=_cparams(("parallel",)),
            cost_estimate=pl.CostEstimate(
                flops=25 * total, transcendentals=3 * total,
                bytes_accessed=in_bytes + total * logits.dtype.itemsize),
        )(x2d, t2d)
        if rows * _LANES == total:
            return out2d.reshape(orig_shape)          # zero-copy fast path
        return out2d.reshape(-1)[:total].reshape(orig_shape)

    # ---- sum / mean: streamed reduction into per-slice (8,128) partials ----
    n_split = max(1, min(n_split, n_tiles))           # never split tiny inputs
    n_tiles_p = _round_up(n_tiles, n_split)
    inner = n_tiles_p // n_split
    # First tile index whose element range reaches past `total` (needs mask).
    first_tail_tile = total // (tile_rows * _LANES)

    def in_map(c, i):
        # Clamp so split rounding never produces a fully out-of-bounds block;
        # replicated tiles contribute 0 via the in-kernel mask.
        return (jnp.minimum(c * inner + i, n_tiles - 1), 0)

    in_spec = pl.BlockSpec((tile_rows, _LANES), in_map)
    out_spec = pl.BlockSpec((8, _LANES), lambda c, i: (c, 0))

    kernel = functools.partial(_reduce_kernel, alpha=alpha, gamma=gamma,
                               total=total, tile_rows=tile_rows, inner=inner,
                               first_tail_tile=first_tail_tile)
    partials = pl.pallas_call(
        kernel,
        out_shape=jax.ShapeDtypeStruct((n_split * 8, _LANES), jnp.float32),
        grid_spec=pltpu.PrefetchScalarGridSpec(
            num_scalar_prefetch=0,
            grid=(n_split, inner),
            in_specs=[in_spec, in_spec],
            out_specs=out_spec,
        ),
        compiler_params=_cparams(("parallel", "arbitrary")),
        cost_estimate=pl.CostEstimate(
            flops=25 * total, transcendentals=3 * total,
            bytes_accessed=in_bytes + n_split * 8 * _LANES * 4),
    )(x2d, t2d)

    total_sum = jnp.sum(partials)          # tiny final fold in XLA
    if reduction == "sum":
        return total_sum
    return total_sum / jnp.float32(total)


class BinaryFocalLossWithLogits:
    """JAX/Pallas counterpart of the PyTorch module (no learnable params)."""

    def __init__(self, alpha, gamma=2.0):
        self.alpha = float(alpha)
        self.gamma = float(gamma)

    def __call__(self, logits, target, reduction="mean"):
        return binary_focal_loss_with_logits_pallas(
            logits, target, self.alpha, self.gamma, reduction)


def _reference(logits, target, alpha, gamma, reduction):
    """Independent reference: direct translation of the PyTorch formula."""
    x = logits.astype(jnp.float32)
    t = target.astype(jnp.float32)
    probs_pos = jax.nn.sigmoid(x)
    probs_neg = jax.nn.sigmoid(-x)
    loss = (-alpha * jnp.power(probs_neg, gamma) * t * jax.nn.log_sigmoid(x)
            - (1.0 - alpha) * jnp.power(probs_pos, gamma) * (1.0 - t)
            * jax.nn.log_sigmoid(-x))
    if reduction == "mean":
        return jnp.mean(loss)
    if reduction == "sum":
        return jnp.sum(loss)
    return loss


if __name__ == "__main__":
    key = jax.random.PRNGKey(0)
    k1, k2, k3, k4 = jax.random.split(key, 4)

    module = BinaryFocalLossWithLogits(alpha=0.25, gamma=2.0)

    # Lane-aligned case (total % 128 == 0): zero-copy fast path.
    B, C, H, W = 2, 4, 16, 16
    logits = jax.random.normal(k1, (B, C, H, W), dtype=jnp.float32) * 2.0
    target = (jax.random.uniform(k2, (B, C, H, W)) > 0.5).astype(jnp.float32)

    out_none = jax.block_until_ready(module(logits, target, reduction="none"))
    out_mean = jax.block_until_ready(module(logits, target, reduction="mean"))
    out_sum = jax.block_until_ready(module(logits, target, reduction="sum"))

    ref_none = _reference(logits, target, 0.25, 2.0, "none")
    ref_mean = _reference(logits, target, 0.25, 2.0, "mean")
    ref_sum = _reference(logits, target, 0.25, 2.0, "sum")

    assert out_none.shape == (B, C, H, W)
    assert np.allclose(np.asarray(out_none), np.asarray(ref_none), rtol=1e-5, atol=1e-5)
    assert np.allclose(np.asarray(out_mean), np.asarray(ref_mean), rtol=1e-5, atol=1e-5)
    assert np.allclose(np.asarray(out_sum), np.asarray(ref_sum), rtol=1e-5, atol=1e-2)

    # Ragged case (total % 128 != 0): exercises the tail pad + in-kernel mask.
    shp = (2, 3, 5, 7)
    logits_r = jax.random.normal(k3, shp, dtype=jnp.float32) * 2.0
    target_r = (jax.random.uniform(k4, shp) > 0.5).astype(jnp.float32)

    out_none_r = jax.block_until_ready(module(logits_r, target_r, reduction="none"))
    out_mean_r = jax.block_until_ready(module(logits_r, target_r, reduction="mean"))
    out_sum_r = jax.block_until_ready(module(logits_r, target_r, reduction="sum"))

    assert out_none_r.shape == shp
    assert np.allclose(np.asarray(out_none_r),
                       np.asarray(_reference(logits_r, target_r, 0.25, 2.0, "none")),
                       rtol=1e-5, atol=1e-5)
    assert np.allclose(np.asarray(out_mean_r),
                       np.asarray(_reference(logits_r, target_r, 0.25, 2.0, "mean")),
                       rtol=1e-5, atol=1e-5)
    assert np.allclose(np.asarray(out_sum_r),
                       np.asarray(_reference(logits_r, target_r, 0.25, 2.0, "sum")),
                       rtol=1e-5, atol=1e-3)

    print("KERNEL_OK")
</pallas_src>

<mosaic_0001>
module attributes {stable_mosaic.version = 11 : i64} {
  func.func @_elem_kernel(%arg0: i32, %arg1: memref<16x128xf32, #tpu.memory_space<vmem>>, %arg2: memref<16x128xf32, #tpu.memory_space<vmem>>, %arg3: memref<16x128xf32, #tpu.memory_space<vmem>>) attributes {dimension_semantics = [#tpu.dimension_semantics<parallel>], iteration_bounds = array<i64: 1>, scalar_prefetch = 0 : i64, scratch_operands = 0 : i64, tpu.core_type = #tpu.core_type<tc>, window_params = [{transform_indices = @transform_0, window_bounds = array<i64: 16, 128>}, {transform_indices = @transform_1, window_bounds = array<i64: 16, 128>}, {transform_indices = @transform_2, window_bounds = array<i64: 16, 128>}]} {
    %c0 = arith.constant 0 : index
    %c0_0 = arith.constant 0 : index
    %0 = vector.load %arg1[%c0, %c0_0] : memref<16x128xf32, #tpu.memory_space<vmem>>, vector<16x128xf32>
    %c0_1 = arith.constant 0 : index
    %c0_2 = arith.constant 0 : index
    %1 = vector.load %arg2[%c0_1, %c0_2] : memref<16x128xf32, #tpu.memory_space<vmem>>, vector<16x128xf32>
    %2 = math.absf %0 : vector<16x128xf32>
    %cst = arith.constant 0.000000e+00 : f32
    %3 = vector.broadcast %cst : f32 to vector<16x128xf32>
    %4 = arith.subf %3, %2 : vector<16x128xf32>
    %5 = math.exp %4 : vector<16x128xf32>
    %cst_3 = arith.constant 1.000000e+00 : f32
    %6 = vector.broadcast %cst_3 : f32 to vector<16x128xf32>
    %7 = arith.addf %6, %5 : vector<16x128xf32>
    %8 = tpu.reciprocal %7 : vector<16x128xf32> -> vector<16x128xf32>
    %cst_4 = arith.constant 0.000000e+00 : f32
    %9 = vector.broadcast %cst_4 : f32 to vector<16x128xf32>
    %10 = arith.cmpf oge, %0, %9 : vector<16x128xf32>
    %cst_5 = arith.constant 1.000000e+00 : f32
    %11 = vector.broadcast %cst_5 : f32 to vector<16x128xf32>
    %12 = arith.select %10, %11, %5 : vector<16x128xi1>, vector<16x128xf32>
    %13 = arith.mulf %12, %8 : vector<16x128xf32>
    %cst_6 = arith.constant 1.000000e+00 : f32
    %14 = vector.broadcast %cst_6 : f32 to vector<16x128xf32>
    %15 = arith.subf %14, %13 : vector<16x128xf32>
    %cst_7 = arith.constant 0.000000e+00 : f32
    %16 = vector.broadcast %cst_7 : f32 to vector<16x128xf32>
    %17 = arith.minimumf %0, %16 : vector<16x128xf32>
    %18 = math.log1p %5 : vector<16x128xf32>
    %19 = arith.subf %17, %18 : vector<16x128xf32>
    %20 = arith.subf %19, %0 : vector<16x128xf32>
    %21 = arith.mulf %15, %15 : vector<16x128xf32>
    %cst_8 = arith.constant -2.500000e-01 : f32
    %22 = vector.broadcast %cst_8 : f32 to vector<16x128xf32>
    %23 = arith.mulf %22, %21 : vector<16x128xf32>
    %24 = arith.mulf %23, %1 : vector<16x128xf32>
    %25 = arith.mulf %24, %19 : vector<16x128xf32>
    %26 = arith.mulf %13, %13 : vector<16x128xf32>
    %cst_9 = arith.constant 7.500000e-01 : f32
    %27 = vector.broadcast %cst_9 : f32 to vector<16x128xf32>
    %28 = arith.mulf %27, %26 : vector<16x128xf32>
    %cst_10 = arith.constant 1.000000e+00 : f32
    %29 = vector.broadcast %cst_10 : f32 to vector<16x128xf32>
    %30 = arith.subf %29, %1 : vector<16x128xf32>
    %31 = arith.mulf %28, %30 : vector<16x128xf32>
    %32 = arith.mulf %31, %20 : vector<16x128xf32>
    %33 = arith.subf %25, %32 : vector<16x128xf32>
    %c0_11 = arith.constant 0 : index
    %c0_12 = arith.constant 0 : index
    %34 = vector.load %arg3[%c0_11, %c0_12] : memref<16x128xf32, #tpu.memory_space<vmem>>, vector<16x128xf32>
    tpu.vector_store %arg3[%c0_11, %c0_12], %33 {strides = array<i32>} : memref<16x128xf32, #tpu.memory_space<vmem>>, vector<16x128xf32>,
    return
  }
  func.func @transform_0(%arg0: i32) -> (i32, i32) {
    %c0_i32 = arith.constant 0 : i32
    %c0_i32_0 = arith.constant 0 : i32
    return %arg0, %c0_i32 : i32, i32
  }
  func.func @transform_1(%arg0: i32) -> (i32, i32) {
    %c0_i32 = arith.constant 0 : i32
    %c0_i32_0 = arith.constant 0 : i32
    return %arg0, %c0_i32 : i32, i32
  }
  func.func @transform_2(%arg0: i32) -> (i32, i32) {
    %c0_i32 = arith.constant 0 : i32
    %c0_i32_0 = arith.constant 0 : i32
    return %arg0, %c0_i32 : i32, i32
  }
}

</mosaic_0001>

<llo_original>
// kernel: tpu_custom_call.1
$region0: #{tpu_custom_call.1}
  #allocation0 [shape = 'u32[]', space=smem, size = 0x4, offset = 0x4, fixed_abs, tag = 'smem constant byte address 0x4 - core index']
  #allocation1 [shape = 'u32[72,128]{1,0:T(1,128)}', space=vmem, size = 0x9000, scoped, tag = 'internal scratch']
  %s0 = inlined_call_operand.hbm [shape: f32[16,128], index: 0, kind: input, shape index: {}]
  %s1 = inlined_call_operand.hbm [shape: f32[16,128], index: 1, kind: input, shape index: {}]
  %s2 = inlined_call_operand.hbm [shape: f32[16,128], index: 2, kind: output, shape index: {}]
  %s3 = sld [smem:[#allocation0]]
  $region26: #{tpu_custom_call.1} parent=0
    _
  %s5 = ssub.s32 1, %s3
  %s6 = scalar_select 0, %s5, %s3
  $region1: #{tpu_custom_call.1} parent=0
    #allocation2 [shape = 'u8[8192]{0}', space=vmem, size = 0x2000, scoped, tag = 'input window, operand 0, single buffered']
    #allocation3 [shape = 's32[1]{0}', space=sflag, size = 0x4, scoped, tag = 'scoped memory for tpu_custom_call.1']
    #allocation4 [shape = 's32[1]{0}', space=sflag, size = 0x4, scoped, tag = 'scoped memory for tpu_custom_call.1']
    #allocation5 [shape = 'u8[8192]{0}', space=vmem, size = 0x2000, scoped, tag = 'input window, operand 1, single buffered']
    #allocation6 [shape = 's32[1]{0}', space=sflag, size = 0x4, scoped, tag = 'scoped memory for tpu_custom_call.1']
    #allocation7 [shape = 'u8[8192]{0}', space=vmem, size = 0x2000, scoped, tag = 'output window, operand 0, single buffered']
    %7 = vsyncpa [#allocation3], 0
    %8 = vsyncpa [#allocation6], 0
    %9 = vsyncpa [#allocation4], 0
    // Predicated region
    $region2: #{tpu_custom_call.1} parent=1 // pred_check
      _
    $region3: #{tpu_custom_call.1} parent=1 // pred_check_branch
      %11 = sbr.rel (0) target = $region5
    $region4: #{tpu_custom_call.1} parent=1 // pred_region
      %13 = vsyncadd [#allocation3], 0
      %s14 = sshll.u32 %s0, 4
      %s15 = int_to_ptr.hbm [resolvable:$true] %s14
      %s16 = sshll.u32 [#allocation2], 4
      %s17 = int_to_ptr.vmem [resolvable:$true] %s16
      %22 = dma.hbm_to_vmem [thread:$0]  %s15, 256, %s17, [#allocation3], 128, 128, 8
    $region5: #{tpu_custom_call.1} parent=1 // pred_fallthru
      _
    // Predicated region
    $region6: #{tpu_custom_call.1} parent=1 // pred_check
      _
    $region7: #{tpu_custom_call.1} parent=1 // pred_check_branch
      %24 = sbr.rel (0) target = $region9
    $region8: #{tpu_custom_call.1} parent=1 // pred_region
      %26 = vsyncadd [#allocation6], 0
      %s27 = sshll.u32 %s1, 4
      %s28 = int_to_ptr.hbm [resolvable:$true] %s27
      %s29 = sshll.u32 [#allocation5], 4
      %s30 = int_to_ptr.vmem [resolvable:$true] %s29
      %35 = dma.hbm_to_vmem [thread:$0]  %s28, 256, %s30, [#allocation6], 128, 128, 8
    $region9: #{tpu_custom_call.1} parent=1 // pred_fallthru
      _
    // Predicated region
    $region10: #{tpu_custom_call.1} parent=1 // pred_check
      _
    $region11: #{tpu_custom_call.1} parent=1 // pred_check_branch
      %37 = sbr.rel (0) target = $region13
    $region12: #{tpu_custom_call.1} parent=1 // pred_region
      %39 = dma.done [#allocation3], 256
    $region13: #{tpu_custom_call.1} parent=1 // pred_fallthru
      _
    // Predicated region
    $region14: #{tpu_custom_call.1} parent=1 // pred_check
      _
    $region15: #{tpu_custom_call.1} parent=1 // pred_check_branch
      %41 = sbr.rel (0) target = $region17
    $region16: #{tpu_custom_call.1} parent=1 // pred_region
      %43 = dma.done [#allocation6], 256
    $region17: #{tpu_custom_call.1} parent=1 // pred_fallthru
      _
    %v44 = vld [vmem:[#allocation2] sm:$0xff]
    %v45 = vld [vmem:[#allocation2 + $0x8] sm:$0xff]
    %v46 = vld [vmem:[#allocation5] sm:$0xff]
    %v47 = vld [vmem:[#allocation5 + $0x8] sm:$0xff]
    %v48 = vand.u32 2147483647, %v44
    %v49 = vand.u32 2147483647, %v45
    %v50 = vsub.f32 0.0, %v48
    %v51 = vsub.f32 0.0, %v49
    %v52 = vmul.f32 %v50, 1.442695
    %v53 = vpow.pop %v52
    %v54 = vmul.f32 %v51, 1.442695
    %v55 = vpow.pop %v54
    %v56 = vadd.f32 %v53, 1.0
    %v57 = vadd.f32 %v55, 1.0
    %v58 = vrcp.pop %v56
    %v59 = vmul.f32 %v56, %v58
    %v60 = vsub.f32 1.0, %v59
    %v61 = vmul.f32 %v58, %v60
    %v62 = vadd.f32 %v58, %v61
    %vm63 = vweird.f32 %v56
    %vm64 = vweird.f32 %v58
    %vm65 = vmor %vm63, %vm64
    %v66 = vsel %vm65, %v58, %v62
    %v67 = vand.u32 2147483647, %v56
    %vm68 = vcmp.eq.f32.partialorder %v67, 8.507059e+37
    %v69 = vand.u32 %v56, 2147483648
    %v70 = vor.u32 1.1754944e-38, %v69
    %v71 = vsel %vm68, %v70, %v66
    %v72 = vrcp.pop %v57
    %v73 = vmul.f32 %v57, %v72
    %v74 = vsub.f32 1.0, %v73
    %v75 = vmul.f32 %v72, %v74
    %v76 = vadd.f32 %v72, %v75
    %vm77 = vweird.f32 %v57
    %vm78 = vweird.f32 %v72
    %vm79 = vmor %vm77, %vm78
    %v80 = vsel %vm79, %v72, %v76
    %v81 = vand.u32 2147483647, %v57
    %vm82 = vcmp.eq.f32.partialorder %v81, 8.507059e+37
    %v83 = vand.u32 %v57, 2147483648
    %v84 = vor.u32 1.1754944e-38, %v83
    %v85 = vsel %vm82, %v84, %v80
    %vm86 = vcmp.ge.f32.partialorder %v44, 0.0
    %vm87 = vcmp.ge.f32.partialorder %v45, 0.0
    %v88 = vsel %vm86, 1.0, %v53
    %v89 = vsel %vm87, 1.0, %v55
    %v90 = vmul.f32 %v88, %v71
    %v91 = vmul.f32 %v89, %v85
    %v92 = vsub.f32 1.0, %v90
    %v93 = vsub.f32 1.0, %v91
    %v94 = vmin.f32 %v44, 0.0
    %v95 = vmin.f32 %v45, 0.0
    %v96 = vadd.f32 %v53, 1.0
    %v97 = vlog2.pop %v96
    %v98 = vmul.f32 %v97, 0.6931472
    %v99 = vmul.f32 -0.5, %v53
    %v100 = vadd.f32 %v99, 1.0
    %v101 = vmul.f32 %v100, %v53
    %v102 = vand.u32 2147483647, %v53
    %vm103 = vcmp.lt.f32.partialorder %v102, 0.0004427343
    %v104 = vsel %vm103, %v101, %v98
    %v105 = vadd.f32 %v55, 1.0
    %v106 = vlog2.pop %v105
    %v107 = vmul.f32 %v106, 0.6931472
    %v108 = vmul.f32 -0.5, %v55
    %v109 = vadd.f32 %v108, 1.0
    %v110 = vmul.f32 %v109, %v55
    %v111 = vand.u32 2147483647, %v55
    %vm112 = vcmp.lt.f32.partialorder %v111, 0.0004427343
    %v113 = vsel %vm112, %v110, %v107
    %v114 = vsub.f32 %v94, %v104
    %v115 = vsub.f32 %v95, %v113
    %v116 = vsub.f32 %v114, %v44
    %v117 = vsub.f32 %v115, %v45
    %v118 = vmul.f32 %v92, %v92
    %v119 = vmul.f32 %v93, %v93
    %v120 = vmul.f32 %v118, -0.25
    %v121 = vmul.f32 %v119, -0.25
    %v122 = vmul.f32 %v120, %v46
    %v123 = vmul.f32 %v121, %v47
    %v124 = vmul.f32 %v122, %v114
    %v125 = vmul.f32 %v123, %v115
    %v126 = vmul.f32 %v90, %v90
    %v127 = vmul.f32 %v91, %v91
    %v128 = vmul.f32 %v126, 0.75
    %v129 = vmul.f32 %v127, 0.75
    %v130 = vsub.f32 1.0, %v46
    %v131 = vsub.f32 1.0, %v47
    %v132 = vmul.f32 %v128, %v130
    %v133 = vmul.f32 %v129, %v131
    %v134 = vmul.f32 %v132, %v116
    %v135 = vmul.f32 %v133, %v117
    %v136 = vsub.f32 %v124, %v134
    %v137 = vsub.f32 %v125, %v135
    %138 = vst [vmem:[#allocation7] sm:$0xff] %v136
    %139 = vst [vmem:[#allocation7 + $0x8] sm:$0xff] %v137
    // Predicated region
    $region18: #{tpu_custom_call.1} parent=1 // pred_check
      _
    $region19: #{tpu_custom_call.1} parent=1 // pred_check_branch
      %141 = sbr.rel (0) target = $region21
    $region20: #{tpu_custom_call.1} parent=1 // pred_region
      %143 = vsyncadd [#allocation4], 0
      %s144 = sshll.u32 [#allocation7], 4
      %s145 = int_to_ptr.vmem [resolvable:$true] %s144
      %s146 = sshll.u32 %s2, 4
      %s147 = int_to_ptr.hbm [resolvable:$true] %s146
      %152 = dma.vmem_to_hbm [thread:$0]  %s145, 256, %s147, [#allocation4], 128, 128, 8
    $region21: #{tpu_custom_call.1} parent=1 // pred_fallthru
      _
    // Predicated region
    $region22: #{tpu_custom_call.1} parent=1 // pred_check
      _
    $region23: #{tpu_custom_call.1} parent=1 // pred_check_branch
      %154 = sbr.rel (0) target = $region25
    $region24: #{tpu_custom_call.1} parent=1 // pred_region
      %156 = dma.done [#allocation4], 256
    $region25: #{tpu_custom_call.1} parent=1 // pred_fallthru
      _
    %157 = vsyncpa [#allocation3], 1
    %158 = vsyncpa [#allocation6], 1
    %159 = vsyncpa [#allocation4], 1

</llo_original>
